<compile_context>
chip_gen: v6e
topology: v6e:2x2x1
jax: 0.10.0
libtpu: 0.0.40
codegen_flags: <defaults>
</compile_context>

<pallas_src>
import functools

import jax
import jax.numpy as jnp
from jax import lax
from jax.experimental import pallas as pl
from jax.experimental.pallas import tpu as pltpu


def _mlm_head_kernel(x_ref, w1_ref, b1_ref, gamma_ref, beta_ref,
                     w2_ref, b2_ref, out_ref, h_scratch, *, eps):
    """Fused (x @ W1 + b1) -> GELU -> LayerNorm -> (@ W2 tile + b2 tile)."""
    j = pl.program_id(1)

    # Hidden state depends only on the row tile i; compute it once per row
    # tile (vocab axis j is the innermost, sequential "arbitrary" grid axis).
    @pl.when(j == 0)
    def _compute_hidden():
        # dense: [tm, H] @ [H, H], f32 accumulation on the MXU
        h = jnp.dot(x_ref[...], w1_ref[...],
                    preferred_element_type=jnp.float32) + b1_ref[...]
        # exact erf-based GELU (matches torch.nn.GELU default), f32 math
        h = 0.5 * h * (1.0 + lax.erf(h * 0.7071067811865476))
        # LayerNorm over the hidden dim, f32 math. Padded rows (if any) are
        # garbage-in/garbage-out but row-independent and masked on store.
        mean = jnp.mean(h, axis=-1, keepdims=True)
        var = jnp.mean((h - mean) ** 2, axis=-1, keepdims=True)
        h = (h - mean) * lax.rsqrt(var + eps)
        h = h * gamma_ref[...] + beta_ref[...]
        # store in the MXU compute dtype so the decoder consumes it directly
        h_scratch[...] = h.astype(h_scratch.dtype)

    # decoder: [tm, H] @ [H, tv] + [1, tv], f32 accumulation
    out = jnp.dot(h_scratch[...], w2_ref[...],
                  preferred_element_type=jnp.float32) + b2_ref[...]
    out_ref[...] = out.astype(out_ref.dtype)


def _round_up(n, m):
    return ((n + m - 1) // m) * m


def _maybe_cast(a, dtype):
    # No-op (no extra HBM pass) when the caller pre-cast the tensor.
    return a if a.dtype == jnp.dtype(dtype) else a.astype(dtype)


def _vmem_capacity_bytes():
    try:
        return int(pltpu.get_tpu_info().vmem_capacity_bytes)
    except Exception:
        return 64 * 1024 * 1024  # conservative: v7x per-TensorCore VMEM


def _working_set_bytes(tm, tv, H, c_item, o_item):
    return (2 * tm * H * c_item        # x row tile (double-buffered)
            + 2 * H * tv * c_item      # W2 vocab tile (double-buffered)
            + 2 * tm * tv * o_item     # out tile (double-buffered)
            + 2 * H * H * c_item       # W1 (constant index map, 2 bufs)
            + 2 * 3 * H * 4            # b1 / gamma / beta
            + 2 * tv * 4               # b2 tile
            + tm * H * c_item)         # h_scratch


def mlm_head(x, w1, b1, gamma, beta, w2, b2, *, eps=1e-12,
             tm=1024, tv=512, compute_dtype=jnp.bfloat16, out_dtype=None):
    """x: [B, S, H] -> logits [B, S, V].

    compute_dtype: dtype fed to the MXU. Defaults to bf16 (native MXU path on
      v5e/v6e/v7x); accumulation and GELU/LayerNorm math stay f32. Pre-cast
      x/w1/w2 to compute_dtype once in the caller to avoid per-call casts.
      Expect ~1e-2-level absolute tolerance on logits vs. an f32 reference.
    out_dtype: logits dtype. Defaults to compute_dtype (bf16 halves the
      dominant M*V output write stream on v6e); pass jnp.float32 if needed.
    """
    B, S, H = x.shape
    V = w2.shape[1]
    M = B * S

    compute_dtype = jnp.dtype(compute_dtype)
    out_dtype = jnp.dtype(out_dtype) if out_dtype is not None else compute_dtype
    c_item = compute_dtype.itemsize
    o_item = out_dtype.itemsize

    # --- tile sizing -------------------------------------------------------
    # Lane dim multiple of 128, sublane multiple of 8 (or full extent).
    tv = min(tv, _round_up(V, 128))
    tm = min(tm, _round_up(M, 8))

    # Keep the working set inside a conservative VMEM budget (fits v7x 64 MiB).
    vmem_cap = _vmem_capacity_bytes()
    vmem_budget = int(vmem_cap * 3 // 4)
    while tm > 8 and _working_set_bytes(tm, tv, H, c_item, o_item) > vmem_budget:
        tm = max(8, _round_up(tm // 2, 8))

    # Guarantee >= 2 row tiles when possible so v7x megacore can shard the
    # "parallel" row axis across its two TensorCores.
    if M > 8 and pl.cdiv(M, tm) < 2:
        tm = max(8, _round_up(pl.cdiv(M, 2), 8))

    grid = (pl.cdiv(M, tm), pl.cdiv(V, tv))

    # --- operand prep (no-ops if caller pre-cast) --------------------------
    x2d = _maybe_cast(x.reshape(M, H), compute_dtype)
    w1c = _maybe_cast(w1, compute_dtype)
    w2c = _maybe_cast(w2, compute_dtype)
    # biases / affine params stay f32, shaped [1, N] for clean tiling
    b1_2d = _maybe_cast(b1.reshape(1, H), jnp.float32)
    gamma_2d = _maybe_cast(gamma.reshape(1, H), jnp.float32)
    beta_2d = _maybe_cast(beta.reshape(1, H), jnp.float32)
    b2_2d = _maybe_cast(b2.reshape(1, V), jnp.float32)

    # --- scoped VMEM limit: below physical VMEM, above the working set -----
    ws = _working_set_bytes(tm, tv, H, c_item, o_item)
    vmem_ceiling = int(vmem_cap * 7 // 8)
    vmem_limit = int(min(vmem_ceiling, max(32 * 1024 * 1024, ws * 3 // 2)))

    cost = pl.CostEstimate(
        flops=2 * M * H * H + 2 * M * H * V,
        transcendentals=M * H,
        bytes_accessed=(M * H * c_item + H * H * c_item
                        + grid[0] * H * V * c_item + M * V * o_item),
    )

    out = pl.pallas_call(
        functools.partial(_mlm_head_kernel, eps=float(eps)),
        out_shape=jax.ShapeDtypeStruct((M, V), out_dtype),
        grid_spec=pltpu.PrefetchScalarGridSpec(
            num_scalar_prefetch=0,
            grid=grid,
            in_specs=[
                pl.BlockSpec((tm, H), lambda i, j: (i, 0)),   # x row tile
                pl.BlockSpec((H, H), lambda i, j: (0, 0)),    # W1 (resident)
                pl.BlockSpec((1, H), lambda i, j: (0, 0)),    # b1
                pl.BlockSpec((1, H), lambda i, j: (0, 0)),    # gamma
                pl.BlockSpec((1, H), lambda i, j: (0, 0)),    # beta
                pl.BlockSpec((H, tv), lambda i, j: (0, j)),   # W2 vocab tile
                pl.BlockSpec((1, tv), lambda i, j: (0, j)),   # b2 vocab tile
            ],
            out_specs=pl.BlockSpec((tm, tv), lambda i, j: (i, j)),
            scratch_shapes=[pltpu.VMEM((tm, H), compute_dtype)],
        ),
        compiler_params=pltpu.CompilerParams(
            dimension_semantics=("parallel", "arbitrary"),
            vmem_limit_bytes=vmem_limit),
        cost_estimate=cost,
    )(x2d, w1c, b1_2d, gamma_2d, beta_2d, w2c, b2_2d)

    return out.reshape(B, S, V)


def _reference(x, w1, b1, gamma, beta, w2, b2, eps=1e-12):
    h = jnp.dot(x, w1) + b1
    h = 0.5 * h * (1.0 + lax.erf(h / jnp.sqrt(2.0)))
    mean = jnp.mean(h, axis=-1, keepdims=True)
    var = jnp.mean((h - mean) ** 2, axis=-1, keepdims=True)
    h = (h - mean) * lax.rsqrt(var + eps)
    h = h * gamma + beta
    return jnp.dot(h, w2) + b2


if __name__ == "__main__":
    # Small config consistent with MLMHead: hidden=128, vocab=1024.
    B, S, H, V = 2, 16, 128, 1024
    key = jax.random.PRNGKey(0)
    kx, kw1, kb1, kw2 = jax.random.split(key, 4)

    initializer_range = 0.02
    x = jax.random.normal(kx, (B, S, H), dtype=jnp.float32)
    # Deterministic synthetic parameters ([in, out] layout for weights).
    w1 = jax.random.normal(kw1, (H, H), dtype=jnp.float32) * initializer_range
    b1 = jax.random.normal(kb1, (H,), dtype=jnp.float32) * 0.01
    gamma = jnp.ones((H,), dtype=jnp.float32)
    beta = jnp.zeros((H,), dtype=jnp.float32)
    w2 = jax.random.normal(kw2, (H, V), dtype=jnp.float32) * initializer_range
    b2 = jnp.zeros((V,), dtype=jnp.float32)  # decoder.bias tied to zero-init param

    ref = _reference(x, w1, b1, gamma, beta, w2, b2)

    # Fast path (default): weights/activations pre-cast to bf16 once (as a
    # real model would hold them), bf16 logits. Loose tolerance vs. f32 ref.
    out_bf16 = jax.block_until_ready(
        mlm_head(x.astype(jnp.bfloat16), w1.astype(jnp.bfloat16), b1, gamma,
                 beta, w2.astype(jnp.bfloat16), b2))
    assert out_bf16.shape == (B, S, V)
    assert out_bf16.dtype == jnp.bfloat16
    err_bf16 = jnp.max(jnp.abs(out_bf16.astype(jnp.float32) - ref))
    assert err_bf16 < 5e-2, f"bf16 path max err {err_bf16}"

    # Full-precision path: tight check against the f32 reference.
    out_f32 = jax.block_until_ready(
        mlm_head(x, w1, b1, gamma, beta, w2, b2,
                 compute_dtype=jnp.float32, out_dtype=jnp.float32))
    err_f32 = jnp.max(jnp.abs(out_f32 - ref))
    assert jnp.allclose(out_f32, ref, atol=1e-4, rtol=1e-4), f"f32 max err {err_f32}"

    print("KERNEL_OK")
</pallas_src>

<mosaic_0001>
module attributes {stable_mosaic.version = 11 : i64} {
  func.func @_mlm_head_kernel(%arg0: i32, %arg1: i32, %arg2: memref<16x128xbf16, #tpu.memory_space<vmem>>, %arg3: memref<128x128xbf16, #tpu.memory_space<vmem>>, %arg4: memref<1x128xf32, #tpu.memory_space<vmem>>, %arg5: memref<1x128xf32, #tpu.memory_space<vmem>>, %arg6: memref<1x128xf32, #tpu.memory_space<vmem>>, %arg7: memref<128x512xbf16, #tpu.memory_space<vmem>>, %arg8: memref<1x512xf32, #tpu.memory_space<vmem>>, %arg9: memref<16x512xbf16, #tpu.memory_space<vmem>>, %arg10: memref<16x128xbf16, #tpu.memory_space<vmem>>) attributes {dimension_semantics = [#tpu.dimension_semantics<parallel>, #tpu.dimension_semantics<arbitrary>], iteration_bounds = array<i64: 2, 2>, scalar_prefetch = 0 : i64, scratch_operands = 1 : i64, tpu.core_type = #tpu.core_type<tc>, window_params = [{transform_indices = @transform_0, window_bounds = array<i64: 16, 128>}, {pipeline_mode = #tpu.pipeline_mode<synchronous>, transform_indices = @transform_1, window_bounds = array<i64: 128, 128>}, {pipeline_mode = #tpu.pipeline_mode<synchronous>, transform_indices = @transform_2, window_bounds = array<i64: 1, 128>}, {pipeline_mode = #tpu.pipeline_mode<synchronous>, transform_indices = @transform_3, window_bounds = array<i64: 1, 128>}, {pipeline_mode = #tpu.pipeline_mode<synchronous>, transform_indices = @transform_4, window_bounds = array<i64: 1, 128>}, {transform_indices = @transform_5, window_bounds = array<i64: 128, 512>}, {transform_indices = @transform_6, window_bounds = array<i64: 1, 512>}, {transform_indices = @transform_7, window_bounds = array<i64: 16, 512>}]} {
    %c0_i32 = arith.constant 0 : i32
    %0 = arith.cmpi eq, %arg1, %c0_i32 : i32
    %1 = arith.extui %0 : i1 to i32
    %c0_i32_0 = arith.constant 0 : i32
    %2 = arith.cmpi ne, %1, %c0_i32_0 : i32
    scf.if %2 {
      %c0_8 = arith.constant 0 : index
      %c0_9 = arith.constant 0 : index
      %11 = vector.load %arg2[%c0_8, %c0_9] : memref<16x128xbf16, #tpu.memory_space<vmem>>, vector<16x128xbf16>
      %c0_10 = arith.constant 0 : index
      %c0_11 = arith.constant 0 : index
      %12 = vector.load %arg3[%c0_10, %c0_11] : memref<128x128xbf16, #tpu.memory_space<vmem>>, vector<128x128xbf16>
      %cst_12 = arith.constant dense<0.000000e+00> : vector<16x128xf32>
      %13 = tpu.matmul %11, %12, %cst_12 {dimension_numbers = #tpu.dot_dimension_numbers<[1], [0], [0], [1], [0, 0, 1, 1], [], []>} : vector<16x128xbf16>, vector<128x128xbf16>, vector<16x128xf32> -> vector<16x128xf32>
      %c0_13 = arith.constant 0 : index
      %c0_14 = arith.constant 0 : index
      %14 = vector.load %arg4[%c0_13, %c0_14] : memref<1x128xf32, #tpu.memory_space<vmem>>, vector<1x128xf32>
      %15 = vector.broadcast %14 : vector<1x128xf32> to vector<16x128xf32>
      %16 = arith.addf %13, %15 : vector<16x128xf32>
      %cst_15 = arith.constant 5.000000e-01 : f32
      %17 = vector.broadcast %cst_15 : f32 to vector<16x128xf32>
      %18 = arith.mulf %17, %16 : vector<16x128xf32>
      %cst_16 = arith.constant 0.707106769 : f32
      %19 = vector.broadcast %cst_16 : f32 to vector<16x128xf32>
      %20 = arith.mulf %16, %19 : vector<16x128xf32>
      %21 = math.erf %20 : vector<16x128xf32>
      %cst_17 = arith.constant 1.000000e+00 : f32
      %22 = vector.broadcast %cst_17 : f32 to vector<16x128xf32>
      %23 = arith.addf %22, %21 : vector<16x128xf32>
      %24 = arith.mulf %18, %23 : vector<16x128xf32>
      %cst_18 = arith.constant dense<0.000000e+00> : vector<16xf32>
      %25 = vector.multi_reduction <add>, %24, %cst_18 [1] : vector<16x128xf32> to vector<16xf32>
      %26 = vector.shape_cast %25 : vector<16xf32> to vector<16x1xf32>
      %cst_19 = arith.constant 1.280000e+02 : f32
      %27 = vector.broadcast %cst_19 : f32 to vector<16x1xf32>
      %28 = arith.divf %26, %27 : vector<16x1xf32>
      %29 = vector.broadcast %28 : vector<16x1xf32> to vector<16x128xf32>
      %30 = arith.subf %24, %29 : vector<16x128xf32>
      %31 = arith.mulf %30, %30 : vector<16x128xf32>
      %cst_20 = arith.constant dense<0.000000e+00> : vector<16xf32>
      %32 = vector.multi_reduction <add>, %31, %cst_20 [1] : vector<16x128xf32> to vector<16xf32>
      %33 = vector.shape_cast %32 : vector<16xf32> to vector<16x1xf32>
      %cst_21 = arith.constant 1.280000e+02 : f32
      %34 = vector.broadcast %cst_21 : f32 to vector<16x1xf32>
      %35 = arith.divf %33, %34 : vector<16x1xf32>
      %36 = vector.broadcast %28 : vector<16x1xf32> to vector<16x128xf32>
      %37 = arith.subf %24, %36 : vector<16x128xf32>
      %cst_22 = arith.constant 9.99999996E-13 : f32
      %38 = vector.broadcast %cst_22 : f32 to vector<16x1xf32>
      %39 = arith.addf %35, %38 : vector<16x1xf32>
      %40 = math.rsqrt %39 : vector<16x1xf32>
      %41 = vector.broadcast %40 : vector<16x1xf32> to vector<16x128xf32>
      %42 = arith.mulf %37, %41 : vector<16x128xf32>
      %c0_23 = arith.constant 0 : index
      %c0_24 = arith.constant 0 : index
      %43 = vector.load %arg5[%c0_23, %c0_24] : memref<1x128xf32, #tpu.memory_space<vmem>>, vector<1x128xf32>
      %44 = vector.broadcast %43 : vector<1x128xf32> to vector<16x128xf32>
      %45 = arith.mulf %42, %44 : vector<16x128xf32>
      %c0_25 = arith.constant 0 : index
      %c0_26 = arith.constant 0 : index
      %46 = vector.load %arg6[%c0_25, %c0_26] : memref<1x128xf32, #tpu.memory_space<vmem>>, vector<1x128xf32>
      %47 = vector.broadcast %46 : vector<1x128xf32> to vector<16x128xf32>
      %48 = arith.addf %45, %47 : vector<16x128xf32>
      %49 = arith.truncf %48 : vector<16x128xf32> to vector<16x128xbf16>
      %c0_27 = arith.constant 0 : index
      %c0_28 = arith.constant 0 : index
      %50 = vector.load %arg10[%c0_27, %c0_28] : memref<16x128xbf16, #tpu.memory_space<vmem>>, vector<16x128xbf16>
      tpu.vector_store %arg10[%c0_27, %c0_28], %49 {strides = array<i32>} : memref<16x128xbf16, #tpu.memory_space<vmem>>, vector<16x128xbf16>,
    } else {
    }
    %c0 = arith.constant 0 : index
    %c0_1 = arith.constant 0 : index
    %3 = vector.load %arg10[%c0, %c0_1] : memref<16x128xbf16, #tpu.memory_space<vmem>>, vector<16x128xbf16>
    %c0_2 = arith.constant 0 : index
    %c0_3 = arith.constant 0 : index
    %4 = vector.load %arg7[%c0_2, %c0_3] : memref<128x512xbf16, #tpu.memory_space<vmem>>, vector<128x512xbf16>
    %cst = arith.constant dense<0.000000e+00> : vector<16x512xf32>
    %5 = tpu.matmul %3, %4, %cst {dimension_numbers = #tpu.dot_dimension_numbers<[1], [0], [0], [1], [0, 0, 1, 1], [], []>} : vector<16x128xbf16>, vector<128x512xbf16>, vector<16x512xf32> -> vector<16x512xf32>
    %c0_4 = arith.constant 0 : index
    %c0_5 = arith.constant 0 : index
    %6 = vector.load %arg8[%c0_4, %c0_5] : memref<1x512xf32, #tpu.memory_space<vmem>>, vector<1x512xf32>
    %7 = vector.broadcast %6 : vector<1x512xf32> to vector<16x512xf32>
    %8 = arith.addf %5, %7 : vector<16x512xf32>
    %9 = arith.truncf %8 : vector<16x512xf32> to vector<16x512xbf16>
    %c0_6 = arith.constant 0 : index
    %c0_7 = arith.constant 0 : index
    %10 = vector.load %arg9[%c0_6, %c0_7] : memref<16x512xbf16, #tpu.memory_space<vmem>>, vector<16x512xbf16>
    tpu.vector_store %arg9[%c0_6, %c0_7], %9 {strides = array<i32>} : memref<16x512xbf16, #tpu.memory_space<vmem>>, vector<16x512xbf16>,
    return
  }
  func.func @transform_0(%arg0: i32, %arg1: i32) -> (i32, i32) {
    %c0_i32 = arith.constant 0 : i32
    %c0_i32_0 = arith.constant 0 : i32
    return %arg0, %c0_i32 : i32, i32
  }
  func.func @transform_1(%arg0: i32, %arg1: i32) -> (i32, i32) {
    %c0_i32 = arith.constant 0 : i32
    %c0_i32_0 = arith.constant 0 : i32
    %c0_i32_1 = arith.constant 0 : i32
    return %c0_i32, %c0_i32_0 : i32, i32
  }
  func.func @transform_2(%arg0: i32, %arg1: i32) -> (i32, i32) {
    %c0_i32 = arith.constant 0 : i32
    %c0_i32_0 = arith.constant 0 : i32
    %c0_i32_1 = arith.constant 0 : i32
    return %c0_i32, %c0_i32_0 : i32, i32
  }
  func.func @transform_3(%arg0: i32, %arg1: i32) -> (i32, i32) {
    %c0_i32 = arith.constant 0 : i32
    %c0_i32_0 = arith.constant 0 : i32
    %c0_i32_1 = arith.constant 0 : i32
    return %c0_i32, %c0_i32_0 : i32, i32
  }
  func.func @transform_4(%arg0: i32, %arg1: i32) -> (i32, i32) {
    %c0_i32 = arith.constant 0 : i32
    %c0_i32_0 = arith.constant 0 : i32
    %c0_i32_1 = arith.constant 0 : i32
    return %c0_i32, %c0_i32_0 : i32, i32
  }
  func.func @transform_5(%arg0: i32, %arg1: i32) -> (i32, i32) {
    %c0_i32 = arith.constant 0 : i32
    %c0_i32_0 = arith.constant 0 : i32
    return %c0_i32, %arg1 : i32, i32
  }
  func.func @transform_6(%arg0: i32, %arg1: i32) -> (i32, i32) {
    %c0_i32 = arith.constant 0 : i32
    %c0_i32_0 = arith.constant 0 : i32
    return %c0_i32, %arg1 : i32, i32
  }
  func.func @transform_7(%arg0: i32, %arg1: i32) -> (i32, i32) {
    %c0_i32 = arith.constant 0 : i32
    return %arg0, %arg1 : i32, i32
  }
}

</mosaic_0001>

<llo_original>
// kernel: tpu_custom_call.1
$region0: #{tpu_custom_call.1}
  #allocation0 [shape = 'u32[]', space=smem, size = 0x4, offset = 0x4, fixed_abs, tag = 'smem constant byte address 0x4 - core index']
  #allocation1 [shape = 'u32[144,128]{1,0:T(1,128)}', space=vmem, size = 0x12000, scoped, tag = 'internal scratch']
  #allocation2 [shape = 'bf16[16,128]{1,0:T(8,128)(2,1)}', space=vmem, size = 0x1000, scoped, tag = 'scratch operand']
  %s0 = inlined_call_operand.hbm [shape: bf16[32,128], index: 0, kind: input, shape index: {}]
  %s1 = inlined_call_operand.hbm [shape: bf16[128,128], index: 1, kind: input, shape index: {}]
  %s2 = inlined_call_operand.vmem [shape: f32[1,128], index: 2, kind: input, shape index: {}]
  %s3 = inlined_call_operand.vmem [shape: f32[1,128], index: 3, kind: input, shape index: {}]
  %s4 = inlined_call_operand.hbm [shape: f32[1,128], index: 4, kind: input, shape index: {}]
  %s5 = inlined_call_operand.hbm [shape: bf16[128,1024], index: 5, kind: input, shape index: {}]
  %s6 = inlined_call_operand.vmem [shape: f32[1,1024], index: 6, kind: input, shape index: {}]
  %s7 = inlined_call_operand.hbm [shape: bf16[32,1024], index: 7, kind: output, shape index: {}]
  %s8 = sld [smem:[#allocation0]]
  $region81: #{tpu_custom_call.1} parent=0
    _
  %s10 = ssub.s32 1, %s8
  %s11 = scalar_select 0, %s10, %s8
  $region1: #{tpu_custom_call.1} parent=0
    #allocation3 [shape = 'u8[8192]{0}', space=vmem, size = 0x2000, scoped, tag = 'input window, operand 0']
    #allocation4 [shape = 's32[2]{0}', space=sflag, size = 0x8, scoped, tag = 'scoped memory for tpu_custom_call.1']
    #allocation5 [shape = 's32[2]{0}', space=sflag, size = 0x8, scoped, tag = 'scoped memory for tpu_custom_call.1']
    #allocation6 [shape = 'u8[32768]{0}', space=vmem, size = 0x8000, scoped, tag = 'input window, operand 1, single buffered']
    #allocation7 [shape = 's32[1]{0}', space=sflag, size = 0x4, scoped, tag = 'scoped memory for tpu_custom_call.1']
    #allocation8 [shape = 'u8[512]{0}', space=vmem, size = 0x400, scoped, tag = 'input window, operand 4, single buffered']
    #allocation9 [shape = 'u8[262144]{0}', space=vmem, size = 0x40000, scoped, tag = 'input window, operand 5']
    #allocation10 [shape = 's32[2]{0}', space=sflag, size = 0x8, scoped, tag = 'scoped memory for tpu_custom_call.1']
    #allocation11 [shape = 'u8[32768]{0}', space=vmem, size = 0x8000, scoped, tag = 'output window, operand 0']
    %12 = vsyncpa [#allocation4], 0
    %s13 = scalar_lea.sflag [#allocation4], 1
    %14 = vsyncpa %s13, 0
    %15 = vsyncpa [#allocation7], 0
    %16 = vsyncpa [#allocation10], 0
    %s17 = scalar_lea.sflag [#allocation10], 1
    %18 = vsyncpa %s17, 0
    %19 = vsyncpa [#allocation5], 0
    %s20 = scalar_lea.sflag [#allocation5], 1
    %21 = vsyncpa %s20, 0
    loop: start=0, step=1, limit=6
    $region2: #{tpu_custom_call.1} parent=1 // loop_pre_header
      _
    $region3: #{tpu_custom_call.1} parent=1 // loop_header
      %s23 = sphi 0, %s27
      %p24 = scmp.ge.s32.totalorder %s23, 6
      %s30 = sphi 0, %s42
      %s31 = sphi 0, %s38
      %s32 = sphi 0, %s30
      %s33 = sphi 0, %s31
      %s34 = sphi 0, %s32
      %s35 = sphi 0, %s33
      %s45 = sphi 0, %s47
      %s48 = sphi 0, %s45
      %s49 = sphi 0, %s48
      %s65 = sphi 0, %s49
      %s69 = sphi 0, %s69
      %s71 = sphi 0, %s69
      %s72 = sphi 0, %s71
      %s86 = sphi 0, %s72
      %s90 = sphi 0, %s90
      %s92 = sphi 0, %s90
      %s93 = sphi 0, %s92
      %s107 = sphi 0, %s93
      %s111 = sphi 0, %s111
      %s113 = sphi 0, %s111
      %s114 = sphi 0, %s113
      %s128 = sphi 0, %s114
      %s132 = sphi 0, %s132
      %s134 = sphi 0, %s132
      %s135 = sphi 0, %s134
      %s149 = sphi 0, %s135
      %s155 = sphi 0, %s157
      %s158 = sphi 0, %s155
      %s159 = sphi 0, %s158
      %s175 = sphi 0, %s159
      %s181 = sphi 0, %s183
      %s184 = sphi 0, %s181
      %s185 = sphi 0, %s184
      %s201 = sphi 0, %s185
      %s209 = sphi 0, %s211
      %s212 = sphi 0, %s209
      %s213 = sphi 0, %s212
      %s229 = sphi 0, %s213
    $region4: #{tpu_custom_call.1} parent=1 // loop_header_branch
      %26 = sbr.rel (%p24) target = $region8
    $region5: #{tpu_custom_call.1} parent=1 // loop_body
      %s28 = ssub.s32 %s23, 1
      %s29 = ssub.s32 %s23, 2
      %s36 = sadd.s32 1, %s31
      %p37 = scmp.ge.s32.totalorder %s36, 2
      %s38 = scalar_select %p37, 0, %s36
      %s39 = sadd.s32 1, %s30
      %s40 = scalar_select %p37, %s39, %s30
      %p41 = scmp.ge.s32.totalorder %s40, 2
      %s42 = scalar_select %p41, 0, %s40
      %s43 = ssub.s32 %s30, %s42
      %p44 = scmp.eq.s32.totalorder %s43, 0
      %s46 = sadd.s32 %s45, 1
      %s47 = scalar_select %p44, %s45, %s46
      %p50 = pneg %p44
      %p51 = scmp.eq.s32.totalorder %s23, 3
      %p52 = por %p50, %p51
      %p53 = scmp.ne.s32.totalorder %s45, %s48
      %p54 = scmp.eq.s32.totalorder %s23, 0
      %p55 = por %p53, %p54
      %p56 = scmp.ne.s32.totalorder %s45, %s48
      %p57 = scmp.eq.s32.totalorder %s28, 3
      %p58 = por %p56, %p57
      %p59 = scmp.ne.s32.totalorder %s48, %s49
      %p60 = scmp.eq.s32.totalorder %s28, 0
      %p61 = por %p59, %p60
      %p62 = scmp.ne.s32.totalorder %s48, %s49
      %p63 = scmp.eq.s32.totalorder %s29, 3
      %p64 = por %p62, %p63
      %p66 = scmp.ne.s32.totalorder %s49, %s65
      %p67 = scmp.eq.s32.totalorder %s29, 0
      %p68 = por %p66, %p67
      %s70 = sadd.s32 %s69, 1
      %p73 = scmp.eq.s32.totalorder %s23, 3
      %p74 = scmp.ne.s32.totalorder %s69, %s71
      %p75 = scmp.eq.s32.totalorder %s23, 0
      %p76 = por %p74, %p75
      %p77 = scmp.ne.s32.totalorder %s69, %s71
      %p78 = scmp.eq.s32.totalorder %s28, 3
      %p79 = por %p77, %p78
      %p80 = scmp.ne.s32.totalorder %s71, %s72
      %p81 = scmp.eq.s32.totalorder %s28, 0
      %p82 = por %p80, %p81
      %p83 = scmp.ne.s32.totalorder %s71, %s72
      %p84 = scmp.eq.s32.totalorder %s29, 3
      %p85 = por %p83, %p84
      %p87 = scmp.ne.s32.totalorder %s72, %s86
      %p88 = scmp.eq.s32.totalorder %s29, 0
      %p89 = por %p87, %p88
      %s91 = sadd.s32 %s90, 1
      %p94 = scmp.eq.s32.totalorder %s23, 3
      %p95 = scmp.ne.s32.totalorder %s90, %s92
      %p96 = scmp.eq.s32.totalorder %s23, 0
      %p97 = por %p95, %p96
      %p98 = scmp.ne.s32.totalorder %s90, %s92
      %p99 = scmp.eq.s32.totalorder %s28, 3
      %p100 = por %p98, %p99
      %p101 = scmp.ne.s32.totalorder %s92, %s93
      %p102 = scmp.eq.s32.totalorder %s28, 0
      %p103 = por %p101, %p102
      %p104 = scmp.ne.s32.totalorder %s92, %s93
      %p105 = scmp.eq.s32.totalorder %s29, 3
      %p106 = por %p104, %p105
      %p108 = scmp.ne.s32.totalorder %s93, %s107
      %p109 = scmp.eq.s32.totalorder %s29, 0
      %p110 = por %p108, %p109
      %s112 = sadd.s32 %s111, 1
      %p115 = scmp.eq.s32.totalorder %s23, 3
      %p116 = scmp.ne.s32.totalorder %s111, %s113
      %p117 = scmp.eq.s32.totalorder %s23, 0
      %p118 = por %p116, %p117
      %p119 = scmp.ne.s32.totalorder %s111, %s113
      %p120 = scmp.eq.s32.totalorder %s28, 3
      %p121 = por %p119, %p120
      %p122 = scmp.ne.s32.totalorder %s113, %s114
      %p123 = scmp.eq.s32.totalorder %s28, 0
      %p124 = por %p122, %p123
      %p125 = scmp.ne.s32.totalorder %s113, %s114
      %p126 = scmp.eq.s32.totalorder %s29, 3
      %p127 = por %p125, %p126
      %p129 = scmp.ne.s32.totalorder %s114, %s128
      %p130 = scmp.eq.s32.totalorder %s29, 0
      %p131 = por %p129, %p130
      %s133 = sadd.s32 %s132, 1
      %p136 = scmp.eq.s32.totalorder %s23, 3
      %p137 = scmp.ne.s32.totalorder %s132, %s134
      %p138 = scmp.eq.s32.totalorder %s23, 0
      %p139 = por %p137, %p138
      %p140 = scmp.ne.s32.totalorder %s132, %s134
      %p141 = scmp.eq.s32.totalorder %s28, 3
      %p142 = por %p140, %p141
      %p143 = scmp.ne.s32.totalorder %s134, %s135
      %p144 = scmp.eq.s32.totalorder %s28, 0
      %p145 = por %p143, %p144
      %p146 = scmp.ne.s32.totalorder %s134, %s135
      %p147 = scmp.eq.s32.totalorder %s29, 3
      %p148 = por %p146, %p147
      %p150 = scmp.ne.s32.totalorder %s135, %s149
      %p151 = scmp.eq.s32.totalorder %s29, 0
      %p152 = por %p150, %p151
      %s153 = ssub.s32 %s31, %s38
      %p154 = scmp.eq.s32.totalorder %s153, 0
      %s156 = sadd.s32 %s155, 1
      %s157 = scalar_select %p154, %s155, %s156
      %p160 = pneg %p154
      %p161 = scmp.eq.s32.totalorder %s23, 3
      %p162 = por %p160, %p161
      %p163 = scmp.ne.s32.totalorder %s155, %s158
      %p164 = scmp.eq.s32.totalorder %s23, 0
      %p165 = por %p163, %p164
      %p166 = scmp.ne.s32.totalorder %s155, %s158
      %p167 = scmp.eq.s32.totalorder %s28, 3
      %p168 = por %p166, %p167
      %p169 = scmp.ne.s32.totalorder %s158, %s159
      %p170 = scmp.eq.s32.totalorder %s28, 0
      %p171 = por %p169, %p170
      %p172 = scmp.ne.s32.totalorder %s158, %s159
      %p173 = scmp.eq.s32.totalorder %s29, 3
      %p174 = por %p172, %p173
      %p176 = scmp.ne.s32.totalorder %s159, %s175
      %p177 = scmp.eq.s32.totalorder %s29, 0
      %p178 = por %p176, %p177
      %s179 = ssub.s32 %s31, %s38
      %p180 = scmp.eq.s32.totalorder %s179, 0
      %s182 = sadd.s32 %s181, 1
      %s183 = scalar_select %p180, %s181, %s182
      %p186 = pneg %p180
      %p187 = scmp.eq.s32.totalorder %s23, 3
      %p188 = por %p186, %p187
      %p189 = scmp.ne.s32.totalorder %s181, %s184
      %p190 = scmp.eq.s32.totalorder %s23, 0
      %p191 = por %p189, %p190
      %p192 = scmp.ne.s32.totalorder %s181, %s184
      %p193 = scmp.eq.s32.totalorder %s28, 3
      %p194 = por %p192, %p193
      %p195 = scmp.ne.s32.totalorder %s184, %s185
      %p196 = scmp.eq.s32.totalorder %s28, 0
      %p197 = por %p195, %p196
      %p198 = scmp.ne.s32.totalorder %s184, %s185
      %p199 = scmp.eq.s32.totalorder %s29, 3
      %p200 = por %p198, %p199
      %p202 = scmp.ne.s32.totalorder %s185, %s201
      %p203 = scmp.eq.s32.totalorder %s29, 0
      %p204 = por %p202, %p203
      %s205 = ssub.s32 %s30, %s42
      %s206 = ssub.s32 %s31, %s38
      %s207 = sor.u32 %s205, %s206
      %p208 = scmp.eq.s32.totalorder %s207, 0
      %s210 = sadd.s32 %s209, 1
      %s211 = scalar_select %p208, %s209, %s210
      %p214 = pneg %p208
      %p215 = scmp.eq.s32.totalorder %s23, 3
      %p216 = por %p214, %p215
      %p217 = scmp.ne.s32.totalorder %s209, %s212
      %p218 = scmp.eq.s32.totalorder %s23, 0
      %p219 = por %p217, %p218
      %p220 = scmp.ne.s32.totalorder %s209, %s212
      %p221 = scmp.eq.s32.totalorder %s28, 3
      %p222 = por %p220, %p221
      %p223 = scmp.ne.s32.totalorder %s212, %s213
      %p224 = scmp.eq.s32.totalorder %s28, 0
      %p225 = por %p223, %p224
      %p226 = scmp.ne.s32.totalorder %s212, %s213
      %p227 = scmp.eq.s32.totalorder %s29, 3
      %p228 = por %p226, %p227
      %p230 = scmp.ne.s32.totalorder %s213, %s229
      %p231 = scmp.eq.s32.totalorder %s29, 0
      %p232 = por %p230, %p231
      %p233 = scmp.le.s32.totalorder 1, %s23
      %p234 = scmp.lt.s32.totalorder %s23, 5
      %p235 = pnand %p233, %p234
      %p236 = pneg %p235
      // Predicated region
      $region9: #{tpu_custom_call.1} parent=5 // pred_check
        _
      $region10: #{tpu_custom_call.1} parent=5 // pred_check_branch
        %238 = sbr.rel (%p235) target = $region12
      $region11: #{tpu_custom_call.1} parent=5 // pred_region
        %s239 = ssub.s32 %s23, 1
        // Predicated region
        $region13: #{tpu_custom_call.1} parent=11 // pred_check
          %p240 = pneg %p82
        $region14: #{tpu_custom_call.1} parent=11 // pred_check_branch
          %242 = sbr.rel (%p240) target = $region16
        $region15: #{tpu_custom_call.1} parent=11 // pred_region
          %s244 = ssub.s32 1024, 1024
          %245 = vsyncadd [#allocation7], %s244
          %s246 = sshll.u32 [#allocation6], 4
          %s247 = int_to_ptr.vmem [resolvable:$true] %s246
          %252 = dma.hbm_to_vmem [thread:$0]  %s1, 1024, %s247, [#allocation7], 64, 64, 4
        $region16: #{tpu_custom_call.1} parent=11 // pred_fallthru
          _
        // Predicated region
        $region17: #{tpu_custom_call.1} parent=11 // pred_check
          %p253 = pneg %p103
        $region18: #{tpu_custom_call.1} parent=11 // pred_check_branch
          %255 = sbr.rel (%p253) target = $region20
        $region19: #{tpu_custom_call.1} parent=11 // pred_region
          _
        $region20: #{tpu_custom_call.1} parent=11 // pred_fallthru
          _
        // Predicated region
        $region21: #{tpu_custom_call.1} parent=11 // pred_check
          %p256 = pneg %p124
        $region22: #{tpu_custom_call.1} parent=11 // pred_check_branch
          %258 = sbr.rel (%p256) target = $region24
        $region23: #{tpu_custom_call.1} parent=11 // pred_region
          _
        $region24: #{tpu_custom_call.1} parent=11 // pred_fallthru
          _
        // Predicated region
        $region25: #{tpu_custom_call.1} parent=11 // pred_check
          %p259 = pneg %p145
        $region26: #{tpu_custom_call.1} parent=11 // pred_check_branch
          %261 = sbr.rel (%p259) target = $region28
        $region27: #{tpu_custom_call.1} parent=11 // pred_region
          %s263 = ssub.s32 16, 16
          %264 = vsyncadd [#allocation7], %s263
          %s266 = sshll.u32 [#allocation8], 4
          %s267 = int_to_ptr.vmem [resolvable:$true] %s266
          %269 = dma.hbm_to_vmem [thread:$0]  %s4, 16, %s267, [#allocation7]
        $region28: #{tpu_custom_call.1} parent=11 // pred_fallthru
          _
      $region12: #{tpu_custom_call.1} parent=5 // pred_fallthru
        _
      %p270 = scmp.lt.s32.totalorder %s23, 4
      // Predicated region
      $region29: #{tpu_custom_call.1} parent=5 // pred_check
        %p271 = pneg %p270
      $region30: #{tpu_custom_call.1} parent=5 // pred_check_branch
        %273 = sbr.rel (%p271) target = $region32
      $region31: #{tpu_custom_call.1} parent=5 // pred_region
        // Predicated region
        $region33: #{tpu_custom_call.1} parent=31 // pred_check
          %p274 = pneg %p55
        $region34: #{tpu_custom_call.1} parent=31 // pred_check_branch
          %276 = sbr.rel (%p274) target = $region36
        $region35: #{tpu_custom_call.1} parent=31 // pred_region
          %s277 = sand.u32 %s45, 1
          %s278 = scalar_lea.sflag [#allocation4], %s277
          %s279 = sand.u32 %s45, 1
          %s280 = smul.addr %s279, 8
          %s281 = scalar_lea.vmem [#allocation3], %s280
          %s282 = smul.u32 2, %s30
          %s284 = ssub.s32 128, 128
          %285 = vsyncadd %s278, %s284
          %s286 = smul.addr %s282, 64
          %s287 = scalar_lea.hbm %s0, %s286
          %s288 = sshll.u32 %s281, 4
          %s289 = int_to_ptr.vmem [resolvable:$true] %s288
          %294 = dma.hbm_to_vmem [thread:$0]  %s287, 128, %s289, %s278, 64, 64, 4
        $region36: #{tpu_custom_call.1} parent=31 // pred_fallthru
          _
        // Predicated region
        $region37: #{tpu_custom_call.1} parent=31 // pred_check
          %p295 = pneg %p165
        $region38: #{tpu_custom_call.1} parent=31 // pred_check_branch
          %297 = sbr.rel (%p295) target = $region40
        $region39: #{tpu_custom_call.1} parent=31 // pred_region
          %s298 = sand.u32 %s155, 1
          %s299 = scalar_lea.sflag [#allocation10], %s298
          %s300 = sand.u32 %s155, 1
          %s301 = smul.addr %s300, 256
          %s302 = scalar_lea.vmem [#allocation9], %s301
          %s303 = smul.u32 4, %s31
          %s305 = ssub.s32 4096, 4096
          %306 = vsyncadd %s299, %s305
          %s307 = smul.addr %s303, 64
          %s308 = scalar_lea.hbm %s5, %s307
          %s309 = sshll.u32 %s302, 4
          %s310 = int_to_ptr.vmem [resolvable:$true] %s309
          %315 = dma.hbm_to_vmem [thread:$0]  %s308, 4096, %s310, %s299, 512, 256, 16
        $region40: #{tpu_custom_call.1} parent=31 // pred_fallthru
          _
        // Predicated region
        $region41: #{tpu_custom_call.1} parent=31 // pred_check
          %p316 = pneg %p191
        $region42: #{tpu_custom_call.1} parent=31 // pred_check_branch
          %318 = sbr.rel (%p316) target = $region44
        $region43: #{tpu_custom_call.1} parent=31 // pred_region
          %s319 = smul.u32 4, %s31
          %p320 = scmp.lt.s32.totalorder %s319, 7
          %s321 = scalar_select %p320, %s319, 7
          %s322 = scalar_lea.vmem %s6, %s321
          %s323 = smul.u32 4, %s31
        $region44: #{tpu_custom_call.1} parent=31 // pred_fallthru
          _
      $region32: #{tpu_custom_call.1} parent=5 // pred_fallthru
        _
      %p324 = scmp.le.s32.totalorder 1, %s23
      %p325 = scmp.lt.s32.totalorder %s23, 5
      %p326 = pnand %p324, %p325
      %p327 = pneg %p326
      // Predicated region
      $region45: #{tpu_custom_call.1} parent=5 // pred_check
        _
      $region46: #{tpu_custom_call.1} parent=5 // pred_check_branch
        %329 = sbr.rel (%p326) target = $region48
      $region47: #{tpu_custom_call.1} parent=5 // pred_region
        %s330 = ssub.s32 %s23, 1
        %s331 = sand.u32 %s48, 1
        %s332 = scalar_lea.sflag [#allocation4], %s331
        %s333 = sand.u32 %s48, 1
        %s334 = smul.addr %s333, 8
        %s335 = scalar_lea.vmem [#allocation3], %s334
        // Predicated region
        $region49: #{tpu_custom_call.1} parent=47 // pred_check
          %p336 = pneg %p61
        $region50: #{tpu_custom_call.1} parent=47 // pred_check_branch
          %338 = sbr.rel (%p336) target = $region52
        $region51: #{tpu_custom_call.1} parent=47 // pred_region
          %339 = dma.done %s332, 128
        $region52: #{tpu_custom_call.1} parent=47 // pred_fallthru
          _
        // Predicated region
        $region53: #{tpu_custom_call.1} parent=47 // pred_check
          %p340 = pneg %p82
        $region54: #{tpu_custom_call.1} parent=47 // pred_check_branch
          %342 = sbr.rel (%p340) target = $region56
        $region55: #{tpu_custom_call.1} parent=47 // pred_region
          %343 = dma.done [#allocation7], 1024
        $region56: #{tpu_custom_call.1} parent=47 // pred_fallthru
          _
        // Predicated region
        $region57: #{tpu_custom_call.1} parent=47 // pred_check
          %p344 = pneg %p145
        $region58: #{tpu_custom_call.1} parent=47 // pred_check_branch
          %346 = sbr.rel (%p344) target = $region60
        $region59: #{tpu_custom_call.1} parent=47 // pred_region
          %347 = dma.done [#allocation7], 16
        $region60: #{tpu_custom_call.1} parent=47 // pred_fallthru
          _
        %s348 = sand.u32 %s158, 1
        %s349 = scalar_lea.sflag [#allocation10], %s348
        %s350 = sand.u32 %s158, 1
        %s351 = smul.addr %s350, 256
        %s352 = scalar_lea.vmem [#allocation9], %s351
        // Predicated region
        $region61: #{tpu_custom_call.1} parent=47 // pred_check
          %p353 = pneg %p171
        $region62: #{tpu_custom_call.1} parent=47 // pred_check_branch
          %355 = sbr.rel (%p353) target = $region64
        $region63: #{tpu_custom_call.1} parent=47 // pred_region
          %356 = dma.done %s349, 4096
        $region64: #{tpu_custom_call.1} parent=47 // pred_fallthru
          _
        %s357 = sand.u32 %s48, 1
        %s358 = scalar_lea.sflag [#allocation4], %s357
        %s359 = sand.u32 %s48, 1
        %s360 = smul.addr %s359, 8
        %s361 = scalar_lea.vmem [#allocation3], %s360
        %p362 = pneg %p61
        %p363 = pneg %p58
        %p364 = pneg %p82
        %p365 = pneg %p79
        %p366 = pneg %p103
        %p367 = pneg %p100
        %p368 = pneg %p124
        %p369 = pneg %p121
        %p370 = pneg %p145
        %p371 = pneg %p142
        %s372 = sand.u32 %s158, 1
        %s373 = scalar_lea.sflag [#allocation10], %s372
        %s374 = sand.u32 %s158, 1
        %s375 = smul.addr %s374, 256
        %s376 = scalar_lea.vmem [#allocation9], %s375
        %p377 = pneg %p171
        %p378 = pneg %p168
        %s379 = smul.u32 4, %s33
        %p380 = scmp.lt.s32.totalorder %s379, 7
        %s381 = scalar_select %p380, %s379, 7
        %s382 = scalar_lea.vmem %s6, %s381
        %p383 = pneg %p197
        %p384 = pneg %p194
        %p385 = pneg %p225
        %p386 = pneg %p222
        %s387 = sand.u32 %s212, 1
        %s388 = scalar_lea.sflag [#allocation5], %s387
        %s389 = sand.u32 %s212, 1
        %s390 = smul.addr %s389, 32
        %s391 = scalar_lea.vmem [#allocation11], %s390
        %s392 = smul.u32 2, %s32
        %s393 = smul.u32 4, %s33
        %s394 = smul.u32 4, %s33
        %p395 = scmp.lt.s32.totalorder %s394, 7
        %s396 = scalar_select %p395, %s394, 7
        %s397 = scalar_lea.vmem %s6, %s396
        %s398 = smul.u32 4, %s33
        %s399 = smul.u32 2, %s32
        %s400 = smul.u32 4, %s33
        %p402 = scmp.eq.s32.totalorder %s33, 0
        // Predicated region
        $region65: #{tpu_custom_call.1} parent=47 // pred_check
          %p403 = pneg %p402
        $region66: #{tpu_custom_call.1} parent=47 // pred_check_branch
          %405 = sbr.rel (%p403) target = $region68
        $region67: #{tpu_custom_call.1} parent=47 // pred_region
          %v406 = vld [vmem:[%s335] sm:$0xf]
          %v407 = vld [vmem:[%s335 + $0x4] sm:$0xf]
          %v408 = vld [vmem:[#allocation6] sm:$0xf]
          %v409 = vld [vmem:[#allocation6 + $0x4] sm:$0xf]
          %v410 = vld [vmem:[#allocation6 + $0x8] sm:$0xf]
          %v411 = vld [vmem:[#allocation6 + $0xc] sm:$0xf]
          %v412 = vld [vmem:[#allocation6 + $0x10] sm:$0xf]
          %v413 = vld [vmem:[#allocation6 + $0x14] sm:$0xf]
          %v414 = vld [vmem:[#allocation6 + $0x18] sm:$0xf]
          %v415 = vld [vmem:[#allocation6 + $0x1c] sm:$0xf]
          %v416 = vld [vmem:[#allocation6 + $0x20] sm:$0xf]
          %v417 = vld [vmem:[#allocation6 + $0x24] sm:$0xf]
          %v418 = vld [vmem:[#allocation6 + $0x28] sm:$0xf]
          %v419 = vld [vmem:[#allocation6 + $0x2c] sm:$0xf]
          %v420 = vld [vmem:[#allocation6 + $0x30] sm:$0xf]
          %v421 = vld [vmem:[#allocation6 + $0x34] sm:$0xf]
          %v422 = vld [vmem:[#allocation6 + $0x38] sm:$0xf]
          %v423 = vld [vmem:[#allocation6 + $0x3c] sm:$0xf]
          %v424 = vld [vmem:[%s2] sm:$0x1]
          %v426 = vlaneseq
          %v427 = vshrl.u32 %v426, 7
          %v428 = vsub.s32 0, %v427
          %v429 = vrot.slane %v424, %v428
          %v433 = vunpack.c.l.b16 %v406
          %v434 = vunpack.c.l.b16 %v407
          %v435 = vpack.c.b16 %v434, %v433
          %v453 = vunpack.c.l.b16 %v408
          %v454 = vunpack.c.l.b16 %v409
          %v455 = vunpack.c.l.b16 %v410
          %v456 = vunpack.c.l.b16 %v411
          %v457 = vunpack.c.l.b16 %v412
          %v458 = vunpack.c.l.b16 %v413
          %v459 = vunpack.c.l.b16 %v414
          %v460 = vunpack.c.l.b16 %v415
          %v461 = vunpack.c.l.b16 %v416
          %v462 = vunpack.c.l.b16 %v417
          %v463 = vunpack.c.l.b16 %v418
          %v464 = vunpack.c.l.b16 %v419
          %v465 = vunpack.c.l.b16 %v420
          %v466 = vunpack.c.l.b16 %v421
          %v467 = vunpack.c.l.b16 %v422
          %v468 = vunpack.c.l.b16 %v423
          %v469 = vpack.c.b16 %v454, %v453
          %v470 = vpack.c.b16 %v456, %v455
          %v471 = vpack.c.b16 %v458, %v457
          %v472 = vpack.c.b16 %v460, %v459
          %v473 = vpack.c.b16 %v462, %v461
          %v474 = vpack.c.b16 %v464, %v463
          %v475 = vpack.c.b16 %v466, %v465
          %v476 = vpack.c.b16 %v468, %v467
          %485 = vmatprep.subr.bf16.mxu0 0
          %486 = vmatpush1.bf16.msra.mxu0 %v476
          %487 = vmatprep.subr.bf16.mxu0 0
          %488 = vmatpush1.bf16.msra.mxu0 %v475
          %489 = vmatprep.subr.bf16.mxu0 0
          %490 = vmatpush1.bf16.msra.mxu0 %v474
          %491 = vmatprep.subr.bf16.mxu0 0
          %492 = vmatpush1.bf16.msra.mxu0 %v473
          %493 = vmatprep.subr.bf16.mxu0 0
          %494 = vmatpush1.bf16.msra.mxu0 %v472
          %495 = vmatprep.subr.bf16.mxu0 0
          %496 = vmatpush1.bf16.msra.mxu0 %v471
          %497 = vmatprep.subr.bf16.mxu0 0
          %498 = vmatpush1.bf16.msra.mxu0 %v470
          %499 = vmatprep.subr.bf16.mxu0 0
          %500 = vmatpush1.bf16.msra.mxu0 %v469
          %501 = vmatprep.subr.bf16.mxu0 0
          %502 = vmatpush2.bf16.msra.mxu0 0
          %503 = vmatprep.subr.bf16.mxu0 0
          %504 = vmatpush2.bf16.msra.mxu0 0
          %505 = vmatprep.subr.bf16.mxu0 0
          %506 = vmatpush2.bf16.msra.mxu0 0
          %507 = vmatprep.subr.bf16.mxu0 0
          %508 = vmatpush2.bf16.msra.mxu0 0
          %509 = vmatprep.subr.bf16.mxu0 0
          %510 = vmatpush2.bf16.msra.mxu0 0
          %511 = vmatprep.subr.bf16.mxu0 0
          %512 = vmatpush2.bf16.msra.mxu0 0
          %513 = vmatprep.subr.bf16.mxu0 0
          %514 = vmatpush2.bf16.msra.mxu0 0
          %515 = vmatprep.subr.bf16.mxu0 0
          %516 = vmatpush2.bf16.msra.mxu0 0
          %517 = vmatprep.mubr.bf16.mxu0 0
          %518 = vmatmul.mubr.bf16.gmra.mxu0 %v435
          %v519 = vpop.f32.mrf.mxu0
          %v520 = vadd.f32 %v429, %v519
          %v521 = vpop.f32.mrf.mxu0
          %v522 = vpop.f32.mrf.mxu0
          %v523 = vadd.f32 %v429, %v522
          %v524 = vpop.f32.mrf.mxu0
          %525 = vdwg.mxu0
          %v526 = vmul.f32 %v520, 0.5
          %v527 = vmul.f32 %v523, 0.5
          %v528 = vmul.f32 %v520, 0.70710677
          %v529 = vmul.f32 %v523, 0.70710677
          %v530 = verf.f32.pop %v528
          %v531 = verf.f32.pop %v529
          %v532 = vadd.f32 %v530, 1.0
          %v533 = vadd.f32 %v531, 1.0
          %v534 = vmul.f32 %v526, %v532
          %v535 = vmul.f32 %v527, %v533
          %536 = vadd.xlane.f32.xlu0 %v534
          %v537 = vpop.xlane.xlu0 %536
          %538 = vadd.xlane.f32.xlu0 %v535
          %v539 = vpop.xlane.xlu0 %538
          %v540 = vrcp.pop 128.0
          %v541 = vmul.f32 %v537, %v540
          %v542 = vmul.f32 %v539, %v540
          %v543 = vsub.f32 %v534, %v541
          %v544 = vsub.f32 %v535, %v542
          %v545 = vmul.f32 %v543, %v543
          %v546 = vmul.f32 %v544, %v544
          %547 = vadd.xlane.f32.xlu0 %v545
          %v548 = vpop.xlane.xlu0 %547
          %549 = vadd.xlane.f32.xlu0 %v546
          %v550 = vpop.xlane.xlu0 %549
          %v551 = vmul.f32 %v548, %v540
          %v552 = vmul.f32 %v550, %v540
          %v553 = vadd.f32 %v551, 1e-12
          %v554 = vadd.f32 %v552, 1e-12
          %v555 = vrsqrt.pop %v553
          %v556 = vrsqrt.pop %v554
          %v557 = vmul.f32 %v543, %v555
          %v558 = vmul.f32 %v544, %v556
          %v559 = vld [vmem:[%s3] sm:$0x1]
          %v561 = vlaneseq
          %v562 = vshrl.u32 %v561, 7
          %v563 = vsub.s32 0, %v562
          %v564 = vrot.slane %v559, %v563
          %v566 = vmul.f32 %v557, %v564
          %v567 = vmul.f32 %v558, %v564
          %v568 = vld [vmem:[#allocation8] sm:$0x1]
          %v570 = vlaneseq
          %v571 = vshrl.u32 %v570, 7
          %v572 = vsub.s32 0, %v571
          %v573 = vrot.slane %v568, %v572
          %v575 = vadd.f32 %v566, %v573
          %v576 = vadd.f32 %v567, %v573
          %v577 = vpack.c.bf16 %v576, %v575
          %v579 = vunpack.c.l.b16 %v577
          %v580 = vunpack.c.h.b16 %v577
          %v581 = vpack.c.b16 %v579, %v579
          %v582 = vpack.c.b16 %v580, %v580
          %585 = vst [vmem:[#allocation2] sm:$0xf] %v581
          %586 = vst [vmem:[#allocation2 + $0x4] sm:$0xf] %v582
        $region68: #{tpu_custom_call.1} parent=47 // pred_fallthru
          _
        %v587 = vld [vmem:[#allocation2] sm:$0xf]
        %v588 = vld [vmem:[#allocation2 + $0x4] sm:$0xf]
        %v589 = vld [vmem:[%s352] sm:$0xff]
        %v590 = vld [vmem:[%s352 + $0x8] sm:$0xff]
        %v591 = vld [vmem:[%s352 + $0x10] sm:$0xff]
        %v592 = vld [vmem:[%s352 + $0x18] sm:$0xff]
        %v593 = vld [vmem:[%s352 + $0x20] sm:$0xff]
        %v594 = vld [vmem:[%s352 + $0x28] sm:$0xff]
        %v595 = vld [vmem:[%s352 + $0x30] sm:$0xff]
        %v596 = vld [vmem:[%s352 + $0x38] sm:$0xff]
        %v597 = vld [vmem:[%s352 + $0x40] sm:$0xff]
        %v598 = vld [vmem:[%s352 + $0x48] sm:$0xff]
        %v599 = vld [vmem:[%s352 + $0x50] sm:$0xff]
        %v600 = vld [vmem:[%s352 + $0x58] sm:$0xff]
        %v601 = vld [vmem:[%s352 + $0x60] sm:$0xff]
        %v602 = vld [vmem:[%s352 + $0x68] sm:$0xff]
        %v603 = vld [vmem:[%s352 + $0x70] sm:$0xff]
        %v604 = vld [vmem:[%s352 + $0x78] sm:$0xff]
        %v605 = vld [vmem:[%s352 + $0x80] sm:$0xff]
        %v606 = vld [vmem:[%s352 + $0x88] sm:$0xff]
        %v607 = vld [vmem:[%s352 + $0x90] sm:$0xff]
        %v608 = vld [vmem:[%s352 + $0x98] sm:$0xff]
        %v609 = vld [vmem:[%s352 + $0xa0] sm:$0xff]
        %v610 = vld [vmem:[%s352 + $0xa8] sm:$0xff]
        %v611 = vld [vmem:[%s352 + $0xb0] sm:$0xff]
        %v612 = vld [vmem:[%s352 + $0xb8] sm:$0xff]
        %v613 = vld [vmem:[%s352 + $0xc0] sm:$0xff]
        %v614 = vld [vmem:[%s352 + $0xc8] sm:$0xff]
        %v615 = vld [vmem:[%s352 + $0xd0] sm:$0xff]
        %v616 = vld [vmem:[%s352 + $0xd8] sm:$0xff]
        %v617 = vld [vmem:[%s352 + $0xe0] sm:$0xff]
        %v618 = vld [vmem:[%s352 + $0xe8] sm:$0xff]
        %v619 = vld [vmem:[%s352 + $0xf0] sm:$0xff]
        %v620 = vld [vmem:[%s352 + $0xf8] sm:$0xff]
        %v621 = vld [vmem:[%s397] sm:$0xf]
        %v623 = vlaneseq
        %v624 = vshrl.u32 %v623, 7
        %v625 = vsub.s32 0, %v624
        %v626 = vrot.slane %v621, %v625
        %v627 = vlaneseq
        %v628 = vshrl.u32 %v627, 7
        %v629 = vsub.s32 1, %v628
        %v630 = vrot.slane %v621, %v629
        %v631 = vlaneseq
        %v632 = vshrl.u32 %v631, 7
        %v633 = vsub.s32 2, %v632
        %v634 = vrot.slane %v621, %v633
        %v635 = vlaneseq
        %v636 = vshrl.u32 %v635, 7
        %v637 = vsub.s32 3, %v636
        %v638 = vrot.slane %v621, %v637
        %v645 = vunpack.c.l.b16 %v587
        %v646 = vunpack.c.l.b16 %v588
        %v647 = vpack.c.b16 %v646, %v645
        %v681 = vunpack.c.l.b16 %v589
        %v682 = vunpack.c.h.b16 %v589
        %v683 = vunpack.c.l.b16 %v590
        %v684 = vunpack.c.h.b16 %v590
        %v685 = vunpack.c.l.b16 %v591
        %v686 = vunpack.c.h.b16 %v591
        %v687 = vunpack.c.l.b16 %v592
        %v688 = vunpack.c.h.b16 %v592
        %v689 = vunpack.c.l.b16 %v593
        %v690 = vunpack.c.h.b16 %v593
        %v691 = vunpack.c.l.b16 %v594
        %v692 = vunpack.c.h.b16 %v594
        %v693 = vunpack.c.l.b16 %v595
        %v694 = vunpack.c.h.b16 %v595
        %v695 = vunpack.c.l.b16 %v596
        %v696 = vunpack.c.h.b16 %v596
        %v697 = vunpack.c.l.b16 %v597
        %v698 = vunpack.c.h.b16 %v597
        %v699 = vunpack.c.l.b16 %v598
        %v700 = vunpack.c.h.b16 %v598
        %v701 = vunpack.c.l.b16 %v599
        %v702 = vunpack.c.h.b16 %v599
        %v703 = vunpack.c.l.b16 %v600
        %v704 = vunpack.c.h.b16 %v600
        %v705 = vunpack.c.l.b16 %v601
        %v706 = vunpack.c.h.b16 %v601
        %v707 = vunpack.c.l.b16 %v602
        %v708 = vunpack.c.h.b16 %v602
        %v709 = vunpack.c.l.b16 %v603
        %v710 = vunpack.c.h.b16 %v603
        %v711 = vunpack.c.l.b16 %v604
        %v712 = vunpack.c.h.b16 %v604
        %v713 = vunpack.c.l.b16 %v605
        %v714 = vunpack.c.h.b16 %v605
        %v715 = vunpack.c.l.b16 %v606
        %v716 = vunpack.c.h.b16 %v606
        %v717 = vunpack.c.l.b16 %v607
        %v718 = vunpack.c.h.b16 %v607
        %v719 = vunpack.c.l.b16 %v608
        %v720 = vunpack.c.h.b16 %v608
        %v721 = vunpack.c.l.b16 %v609
        %v722 = vunpack.c.h.b16 %v609
        %v723 = vunpack.c.l.b16 %v610
        %v724 = vunpack.c.h.b16 %v610
        %v725 = vunpack.c.l.b16 %v611
        %v726 = vunpack.c.h.b16 %v611
        %v727 = vunpack.c.l.b16 %v612
        %v728 = vunpack.c.h.b16 %v612
        %v729 = vunpack.c.l.b16 %v613
        %v730 = vunpack.c.h.b16 %v613
        %v731 = vunpack.c.l.b16 %v614
        %v732 = vunpack.c.h.b16 %v614
        %v733 = vunpack.c.l.b16 %v615
        %v734 = vunpack.c.h.b16 %v615
        %v735 = vunpack.c.l.b16 %v616
        %v736 = vunpack.c.h.b16 %v616
        %v737 = vunpack.c.l.b16 %v617
        %v738 = vunpack.c.h.b16 %v617
        %v739 = vunpack.c.l.b16 %v618
        %v740 = vunpack.c.h.b16 %v618
        %v741 = vunpack.c.l.b16 %v619
        %v742 = vunpack.c.h.b16 %v619
        %v743 = vunpack.c.l.b16 %v620
        %v744 = vunpack.c.h.b16 %v620
        %v745 = vpack.c.b16 %v685, %v681
        %v746 = vpack.c.b16 %v686, %v682
        %v747 = vpack.c.b16 %v687, %v683
        %v748 = vpack.c.b16 %v688, %v684
        %v749 = vpack.c.b16 %v693, %v689
        %v750 = vpack.c.b16 %v694, %v690
        %v751 = vpack.c.b16 %v695, %v691
        %v752 = vpack.c.b16 %v696, %v692
        %v753 = vpack.c.b16 %v701, %v697
        %v754 = vpack.c.b16 %v702, %v698
        %v755 = vpack.c.b16 %v703, %v699
        %v756 = vpack.c.b16 %v704, %v700
        %v757 = vpack.c.b16 %v709, %v705
        %v758 = vpack.c.b16 %v710, %v706
        %v759 = vpack.c.b16 %v711, %v707
        %v760 = vpack.c.b16 %v712, %v708
        %v761 = vpack.c.b16 %v717, %v713
        %v762 = vpack.c.b16 %v718, %v714
        %v763 = vpack.c.b16 %v719, %v715
        %v764 = vpack.c.b16 %v720, %v716
        %v765 = vpack.c.b16 %v725, %v721
        %v766 = vpack.c.b16 %v726, %v722
        %v767 = vpack.c.b16 %v727, %v723
        %v768 = vpack.c.b16 %v728, %v724
        %v769 = vpack.c.b16 %v733, %v729
        %v770 = vpack.c.b16 %v734, %v730
        %v771 = vpack.c.b16 %v735, %v731
        %v772 = vpack.c.b16 %v736, %v732
        %v773 = vpack.c.b16 %v741, %v737
        %v774 = vpack.c.b16 %v742, %v738
        %v775 = vpack.c.b16 %v743, %v739
        %v776 = vpack.c.b16 %v744, %v740
        %809 = vmatprep.subr.bf16.mxu0 %v774
        %810 = vmatpush1.bf16.msra.mxu0 %v773
        %811 = vmatprep.subr.bf16.mxu0 %v770
        %812 = vmatpush1.bf16.msra.mxu0 %v769
        %813 = vmatprep.subr.bf16.mxu0 %v766
        %814 = vmatpush1.bf16.msra.mxu0 %v765
        %815 = vmatprep.subr.bf16.mxu0 %v762
        %816 = vmatpush1.bf16.msra.mxu0 %v761
        %817 = vmatprep.subr.bf16.mxu0 %v758
        %818 = vmatpush1.bf16.msra.mxu0 %v757
        %819 = vmatprep.subr.bf16.mxu0 %v754
        %820 = vmatpush1.bf16.msra.mxu0 %v753
        %821 = vmatprep.subr.bf16.mxu0 %v750
        %822 = vmatpush1.bf16.msra.mxu0 %v749
        %823 = vmatprep.subr.bf16.mxu0 %v746
        %824 = vmatpush1.bf16.msra.mxu0 %v745
        %825 = vmatprep.subr.bf16.mxu0 0
        %826 = vmatpush2.bf16.msra.mxu0 0
        %827 = vmatprep.subr.bf16.mxu0 0
        %828 = vmatpush2.bf16.msra.mxu0 0
        %829 = vmatprep.subr.bf16.mxu0 0
        %830 = vmatpush2.bf16.msra.mxu0 0
        %831 = vmatprep.subr.bf16.mxu0 0
        %832 = vmatpush2.bf16.msra.mxu0 0
        %833 = vmatprep.subr.bf16.mxu0 0
        %834 = vmatpush2.bf16.msra.mxu0 0
        %835 = vmatprep.subr.bf16.mxu0 0
        %836 = vmatpush2.bf16.msra.mxu0 0
        %837 = vmatprep.subr.bf16.mxu0 0
        %838 = vmatpush2.bf16.msra.mxu0 0
        %839 = vmatprep.subr.bf16.mxu0 0
        %840 = vmatpush2.bf16.msra.mxu0 0
        %841 = vmatprep.mubr.bf16.mxu0 0
        %842 = vmatmul.mubr.bf16.gmra.mxu0 %v647
        %v843 = vpop.f32.mrf.mxu0
        %v844 = vadd.f32 %v626, %v843
        %v845 = vpop.f32.mrf.mxu0
        %v846 = vadd.f32 %v630, %v845
        %v847 = vpop.f32.mrf.mxu0
        %v848 = vadd.f32 %v626, %v847
        %v849 = vpop.f32.mrf.mxu0
        %v850 = vadd.f32 %v630, %v849
        %851 = vdwg.mxu0
        %852 = vmatprep.subr.bf16.mxu0 %v776
        %853 = vmatpush1.bf16.msra.mxu0 %v775
        %854 = vmatprep.subr.bf16.mxu0 %v772
        %855 = vmatpush1.bf16.msra.mxu0 %v771
        %856 = vmatprep.subr.bf16.mxu0 %v768
        %857 = vmatpush1.bf16.msra.mxu0 %v767
        %858 = vmatprep.subr.bf16.mxu0 %v764
        %859 = vmatpush1.bf16.msra.mxu0 %v763
        %860 = vmatprep.subr.bf16.mxu0 %v760
        %861 = vmatpush1.bf16.msra.mxu0 %v759
        %862 = vmatprep.subr.bf16.mxu0 %v756
        %863 = vmatpush1.bf16.msra.mxu0 %v755
        %864 = vmatprep.subr.bf16.mxu0 %v752
        %865 = vmatpush1.bf16.msra.mxu0 %v751
        %866 = vmatprep.subr.bf16.mxu0 %v748
        %867 = vmatpush1.bf16.msra.mxu0 %v747
        %868 = vmatprep.subr.bf16.mxu0 0
        %869 = vmatpush2.bf16.msra.mxu0 0
        %870 = vmatprep.subr.bf16.mxu0 0
        %871 = vmatpush2.bf16.msra.mxu0 0
        %872 = vmatprep.subr.bf16.mxu0 0
        %873 = vmatpush2.bf16.msra.mxu0 0
        %874 = vmatprep.subr.bf16.mxu0 0
        %875 = vmatpush2.bf16.msra.mxu0 0
        %876 = vmatprep.subr.bf16.mxu0 0
        %877 = vmatpush2.bf16.msra.mxu0 0
        %878 = vmatprep.subr.bf16.mxu0 0
        %879 = vmatpush2.bf16.msra.mxu0 0
        %880 = vmatprep.subr.bf16.mxu0 0
        %881 = vmatpush2.bf16.msra.mxu0 0
        %882 = vmatprep.subr.bf16.mxu0 0
        %883 = vmatpush2.bf16.msra.mxu0 0
        %884 = vmatprep.mubr.bf16.mxu0 0
        %885 = vmatmul.mubr.bf16.gmra.mxu0 %v647
        %v886 = vpop.f32.mrf.mxu0
        %v887 = vadd.f32 %v634, %v886
        %v888 = vpop.f32.mrf.mxu0
        %v889 = vadd.f32 %v638, %v888
        %v890 = vpop.f32.mrf.mxu0
        %v891 = vadd.f32 %v634, %v890
        %v892 = vpop.f32.mrf.mxu0
        %v893 = vadd.f32 %v638, %v892
        %894 = vdwg.mxu0
        %v895 = vpack.c.bf16 %v848, %v844
        %v896 = vpack.c.bf16 %v850, %v846
        %v897 = vpack.c.bf16 %v891, %v887
        %v898 = vpack.c.bf16 %v893, %v889
        %v903 = vunpack.c.l.b16 %v895
        %v904 = vunpack.c.l.b16 %v896
        %v905 = vunpack.c.l.b16 %v897
        %v906 = vunpack.c.l.b16 %v898
        %v907 = vunpack.c.h.b16 %v895
        %v908 = vunpack.c.h.b16 %v896
        %v909 = vunpack.c.h.b16 %v897
        %v910 = vunpack.c.h.b16 %v898
        %v911 = vpack.c.b16 %v904, %v903
        %v912 = vpack.c.b16 %v906, %v905
        %v913 = vpack.c.b16 %v908, %v907
        %v914 = vpack.c.b16 %v910, %v909
        %919 = vst [vmem:[%s391] sm:$0xff] %v911
        %920 = vst [vmem:[%s391 + $0x8] sm:$0xff] %v912
        %921 = vst [vmem:[%s391 + $0x10] sm:$0xff] %v913
        %922 = vst [vmem:[%s391 + $0x18] sm:$0xff] %v914
        %s923 = sand.u32 %s212, 1
        %s924 = scalar_lea.sflag [#allocation5], %s923
        %s925 = sand.u32 %s212, 1
        %s926 = smul.addr %s925, 32
        %s927 = scalar_lea.vmem [#allocation11], %s926
        // Predicated region
        $region69: #{tpu_custom_call.1} parent=47 // pred_check
          %p928 = pneg %p222
        $region70: #{tpu_custom_call.1} parent=47 // pred_check_branch
          %930 = sbr.rel (%p928) target = $region72
        $region71: #{tpu_custom_call.1} parent=47 // pred_region
          %s931 = smul.u32 2, %s32
          %s932 = smul.u32 4, %s33
          %s934 = ssub.s32 512, 512
          %935 = vsyncadd %s924, %s934
          %s936 = smul.addr %s931, 8
          %s937 = sadd.s32 %s932, %s936
          %s938 = smul.addr %s937, 64
          %s939 = scalar_lea.hbm %s7, %s938
          %s940 = sshll.u32 %s927, 4
          %s941 = int_to_ptr.vmem [resolvable:$true] %s940
          %946 = dma.vmem_to_hbm [thread:$0]  %s941, 512, %s939, %s924, 256, 512, 16
        $region72: #{tpu_custom_call.1} parent=47 // pred_fallthru
          _
      $region48: #{tpu_custom_call.1} parent=5 // pred_fallthru
        _
      %p947 = scmp.le.s32.totalorder 2, %s23
      // Predicated region
      $region73: #{tpu_custom_call.1} parent=5 // pred_check
        %p948 = pneg %p947
      $region74: #{tpu_custom_call.1} parent=5 // pred_check_branch
        %950 = sbr.rel (%p948) target = $region76
      $region75: #{tpu_custom_call.1} parent=5 // pred_region
        %s951 = ssub.s32 %s23, 2
        // Predicated region
        $region77: #{tpu_custom_call.1} parent=75 // pred_check
          %p952 = pneg %p228
        $region78: #{tpu_custom_call.1} parent=75 // pred_check_branch
          %954 = sbr.rel (%p952) target = $region80
        $region79: #{tpu_custom_call.1} parent=75 // pred_region
          %s955 = sand.u32 %s213, 1
          %s956 = scalar_lea.sflag [#allocation5], %s955
          %s957 = sand.u32 %s213, 1
          %s958 = smul.addr %s957, 32
          %s959 = scalar_lea.vmem [#allocation11], %s958
          %960 = dma.done %s956, 512
        $region80: #{tpu_custom_call.1} parent=75 // pred_fallthru
          _
      $region76: #{tpu_custom_call.1} parent=5 // pred_fallthru
        _
    $region6: #{tpu_custom_call.1} parent=1 // loop_footer
      %s27 = sadd.s32 1, %s23
    $region7: #{tpu_custom_call.1} parent=1 // loop_footer_branch
      %22 = sbr.rel target = $region3
    $region8: #{tpu_custom_call.1} parent=1 // loop_exit
      _
    %961 = vsyncpa [#allocation4], 1
    %s962 = scalar_lea.sflag [#allocation4], 1
    %963 = vsyncpa %s962, 1
    %964 = vsyncpa [#allocation7], 1
    %965 = vsyncpa [#allocation10], 1
    %s966 = scalar_lea.sflag [#allocation10], 1
    %967 = vsyncpa %s966, 1
    %968 = vsyncpa [#allocation5], 1
    %s969 = scalar_lea.sflag [#allocation5], 1
    %970 = vsyncpa %s969, 1

</llo_original>
